<compile_context>
chip_gen: v7x
topology: tpu7x:2x2x1
jax: 0.10.0
libtpu: 0.0.40
codegen_flags: <defaults>
</compile_context>

<pallas_src>
import functools

import jax
import jax.numpy as jnp
from jax.experimental import pallas as pl
from jax.experimental.pallas import tpu as pltpu

_LANE = 128            # lane-dense head width (advantage cols + critic col + zero pad)
_VMEM_LIMIT = 32 * 1024 * 1024   # safe on v5e/v6e/v7x; kernel uses only a few MB


# ----------------------------- tiling helper ---------------------------------


def _choose_tiling(batch, batch_tile, min_grid_steps=2):
    """Pick (tile, n_tiles, padded_batch): tile is a multiple of 8 sublanes,
    the grid has >= min_grid_steps steps (v7x megacore), and a padded remainder
    tile handles non-divisible batches instead of one huge grid step."""
    tb = min(batch_tile, pl.cdiv(batch, min_grid_steps))
    tb = max(8, ((tb + 7) // 8) * 8)
    nb = max(min_grid_steps, pl.cdiv(batch, tb))
    return tb, nb, nb * tb


def _pad_rows(x, rows):
    return x if x.shape[0] == rows else jnp.pad(x, ((0, rows - x.shape[0]), (0, 0)))


# ----------------------------- kernels ----------------------------------------


def _fused_agent_kernel(obs_ref, w1_ref, b1_ref, w2_ref, b2_ref,
                        wh_ref, bh_ref, out_ref, *, tb, act_col):
    """One grid step: [local tile ; global tile] obs -> x_layer -> head.

    obs_ref : (2*tb, OBS) bf16, rows [0:tb] local, [tb:2tb] global
    wh_ref  : (2H, 128)  bf16 folded head weight (advantage cols + critic col)
    out_ref : (tb, 128)  f32 lane-dense Q slab (cols [0:A] valid)
    """
    H = w2_ref.shape[1]

    # x_layer: Linear(OBS,64) -> ReLU -> Linear(64,H) -> ReLU, both thoughts
    # in one MXU push per layer (rows already stacked by the wrapper DMA).
    h = jnp.dot(obs_ref[...], w1_ref[...],
                preferred_element_type=jnp.float32) + b1_ref[...]
    h = jnp.maximum(h, 0.0).astype(jnp.bfloat16)
    t = jnp.dot(h, w2_ref[...],
                preferred_element_type=jnp.float32) + b2_ref[...]
    t = jnp.maximum(t, 0.0).astype(jnp.bfloat16)          # (2*tb, H)

    lt = t[:tb, :]                                         # local thought
    gt = t[tb:, :]                                         # global thought

    # Head: cat(local, global) @ W as a split matmul with free static ref
    # slices; the critic is column `act_col` of the global-half weight.
    y = (jnp.dot(lt, wh_ref[:H, :], preferred_element_type=jnp.float32)
         + jnp.dot(gt, wh_ref[H:, :], preferred_element_type=jnp.float32)
         + bh_ref[...])                                    # (tb, 128) f32

    v = y[:, act_col:act_col + 1]                          # critic value (tb, 1)
    out_ref[...] = (jnp.tanh(y) + v).astype(out_ref.dtype)


def _thought_kernel(obs_ref, w1_ref, b1_ref, w2_ref, b2_ref, out_ref):
    # x_layer only (module API: get_thought)
    h = jnp.dot(obs_ref[...], w1_ref[...],
                preferred_element_type=jnp.float32) + b1_ref[...]
    h = jnp.maximum(h, 0.0).astype(jnp.bfloat16)
    t = jnp.dot(h, w2_ref[...],
                preferred_element_type=jnp.float32) + b2_ref[...]
    out_ref[...] = jnp.maximum(t, 0.0).astype(out_ref.dtype)


def _head_kernel(lt_ref, gt_ref, wh_ref, bh_ref, out_ref, *, act_col):
    # forward with externally supplied thoughts (module API)
    H = lt_ref.shape[1]
    lt = lt_ref[...].astype(jnp.bfloat16)
    gt = gt_ref[...].astype(jnp.bfloat16)
    y = (jnp.dot(lt, wh_ref[:H, :], preferred_element_type=jnp.float32)
         + jnp.dot(gt, wh_ref[H:, :], preferred_element_type=jnp.float32)
         + bh_ref[...])
    v = y[:, act_col:act_col + 1]
    out_ref[...] = (jnp.tanh(y) + v).astype(out_ref.dtype)


# ----------------------------- wrappers ----------------------------------------


def _whole(arr):
    return pl.BlockSpec(arr.shape, lambda i: (0, 0))


def dqn_agent_forward(obs_local, obs_global, params, *,
                      batch_tile=512, min_grid_steps=2):
    """Fused agent step: (obs_local, obs_global) -> Q-values (B, A). One launch."""
    w1, b1, w2, b2 = params["w1"], params["b1"], params["w2"], params["b2"]
    wh, bh = params["w_head"], params["b_head"]
    A = params["action_space"]
    B, OBS = obs_local.shape

    tb, nb, b_pad = _choose_tiling(B, batch_tile, min_grid_steps)

    # Pre-stack per tile: block i of `obs` is [local tile i ; global tile i].
    # This is layout plumbing in the wrapper (tiny bf16 concat), so the kernel
    # needs no VMEM->VMEM copies and one MXU push per x_layer matmul.
    def prep(o):
        return _pad_rows(o.astype(jnp.bfloat16), b_pad).reshape(nb, tb, OBS)

    obs = jnp.concatenate([prep(obs_local), prep(obs_global)], axis=1)
    obs = obs.reshape(nb * 2 * tb, OBS)

    kernel = functools.partial(_fused_agent_kernel, tb=tb, act_col=A)

    out = pl.pallas_call(
        kernel,
        out_shape=jax.ShapeDtypeStruct((b_pad, _LANE), jnp.float32),
        grid=(nb,),
        in_specs=[pl.BlockSpec((2 * tb, OBS), lambda i: (i, 0)),
                  _whole(w1), _whole(b1), _whole(w2), _whole(b2),
                  _whole(wh), _whole(bh)],
        out_specs=pl.BlockSpec((tb, _LANE), lambda i: (i, 0)),
        compiler_params=pltpu.CompilerParams(
            dimension_semantics=("parallel",),
            vmem_limit_bytes=_VMEM_LIMIT),
    )(obs, w1, b1, w2, b2, wh, bh)

    return out[:B, :A]


def get_thought(obs, params, *, batch_tile=512, min_grid_steps=2):
    """Module API: x_layer(obs) -> thought (B, H). Batch-tiled."""
    w1, b1, w2, b2 = params["w1"], params["b1"], params["w2"], params["b2"]
    B, OBS = obs.shape
    H = w2.shape[1]
    tb, nb, b_pad = _choose_tiling(B, batch_tile, min_grid_steps)
    x = _pad_rows(obs.astype(jnp.bfloat16), b_pad)

    out = pl.pallas_call(
        _thought_kernel,
        out_shape=jax.ShapeDtypeStruct((b_pad, H), jnp.float32),
        grid=(nb,),
        in_specs=[pl.BlockSpec((tb, OBS), lambda i: (i, 0)),
                  _whole(w1), _whole(b1), _whole(w2), _whole(b2)],
        out_specs=pl.BlockSpec((tb, H), lambda i: (i, 0)),
        compiler_params=pltpu.CompilerParams(
            dimension_semantics=("parallel",),
            vmem_limit_bytes=_VMEM_LIMIT),
    )(x, w1, b1, w2, b2)
    return out[:B]


def dqn_forward(local_thought, global_thought, params, *,
                batch_tile=512, min_grid_steps=2):
    """Module API: forward(local_thought, global_thought) -> Q-values (B, A)."""
    wh, bh = params["w_head"], params["b_head"]
    A = params["action_space"]
    B, H = local_thought.shape
    tb, nb, b_pad = _choose_tiling(B, batch_tile, min_grid_steps)
    lt = _pad_rows(local_thought, b_pad)
    gt = _pad_rows(global_thought, b_pad)

    kernel = functools.partial(_head_kernel, act_col=A)
    out = pl.pallas_call(
        kernel,
        out_shape=jax.ShapeDtypeStruct((b_pad, _LANE), jnp.float32),
        grid=(nb,),
        in_specs=[pl.BlockSpec((tb, H), lambda i: (i, 0)),
                  pl.BlockSpec((tb, H), lambda i: (i, 0)),
                  _whole(wh), _whole(bh)],
        out_specs=pl.BlockSpec((tb, _LANE), lambda i: (i, 0)),
        compiler_params=pltpu.CompilerParams(
            dimension_semantics=("parallel",),
            vmem_limit_bytes=_VMEM_LIMIT),
    )(lt, gt, wh, bh)
    return out[:B, :A]


# ----------------------------- parameters --------------------------------------


def init_params(key, obs_space, hidden, action_space, *, zero_critic=True):
    """Raw float32 parameters, PyTorch-equivalent (weights transposed to (in, out))."""
    k1, k2, k3, k4, k5, k6, k7 = jax.random.split(key, 7)
    if zero_critic:
        # matches the module: critic weight/bias filled with 0
        wc = jnp.zeros((hidden, 1), jnp.float32)
        bc = jnp.zeros((1, 1), jnp.float32)
    else:
        wc = jax.random.normal(k6, (hidden, 1), jnp.float32) * 0.1
        bc = jax.random.normal(k7, (1, 1), jnp.float32) * 0.1
    return {
        # x_layer: Linear(obs_space, 64), Linear(64, hidden)
        "w1": jax.random.normal(k1, (obs_space, 64), jnp.float32) * 0.1,
        "b1": jax.random.normal(k2, (1, 64), jnp.float32) * 0.1,
        "w2": jax.random.normal(k3, (64, hidden), jnp.float32) * 0.1,
        "b2": jax.random.normal(k4, (1, hidden), jnp.float32) * 0.1,
        # _critic: Linear(hidden, 1)
        "wc": wc, "bc": bc,
        # _advantage: Linear(hidden * 2, action_space)
        "wa": jax.random.normal(k5, (hidden * 2, action_space), jnp.float32) * 0.1,
        "ba": jnp.zeros((1, action_space), jnp.float32),
    }


def pack_params(raw):
    """Kernel-ready params: bf16 weights, critic folded into a lane-dense head."""
    H = raw["w2"].shape[1]
    A = raw["wa"].shape[1]
    assert A + 1 <= _LANE
    w_head = jnp.zeros((2 * H, _LANE), jnp.float32)
    w_head = w_head.at[:, :A].set(raw["wa"])            # advantage columns
    w_head = w_head.at[H:, A].set(raw["wc"][:, 0])      # critic column (global half)
    b_head = jnp.zeros((1, _LANE), jnp.float32)
    b_head = b_head.at[:, :A].set(raw["ba"])
    b_head = b_head.at[:, A].set(raw["bc"][0, 0])
    return {
        "w1": raw["w1"].astype(jnp.bfloat16), "b1": raw["b1"],
        "w2": raw["w2"].astype(jnp.bfloat16), "b2": raw["b2"],
        "w_head": w_head.astype(jnp.bfloat16),
        "b_head": b_head,                                # bias stays f32
        "action_space": A,                               # static python int
    }


# ----------------------------- main ---------------------------------------------

if __name__ == "__main__":
    B = 8            # batch
    OBS = 16         # obs_space
    HIDDEN = 32      # module hidden_size
    ACTIONS = 4      # action_space

    key = jax.random.PRNGKey(0)
    kp, ko_l, ko_g = jax.random.split(key, 3)
    # zero_critic=False so the folded critic lane is numerically exercised
    # (the module zero-inits it, which would make that path invisible).
    raw = init_params(kp, OBS, HIDDEN, ACTIONS, zero_critic=False)
    params = pack_params(raw)

    obs_local = jax.random.normal(ko_l, (B, OBS), jnp.float32)
    obs_global = jax.random.normal(ko_g, (B, OBS), jnp.float32)

    # fused single-launch agent step
    out = jax.block_until_ready(dqn_agent_forward(obs_local, obs_global, params))

    # reference mirroring the kernel's dtype flow (bf16 operands, f32 accum)
    def bf16_thought(o):
        h = jnp.dot(o.astype(jnp.bfloat16), raw["w1"].astype(jnp.bfloat16),
                    preferred_element_type=jnp.float32) + raw["b1"]
        h = jnp.maximum(h, 0.0).astype(jnp.bfloat16)
        t = jnp.dot(h, raw["w2"].astype(jnp.bfloat16),
                    preferred_element_type=jnp.float32) + raw["b2"]
        return jnp.maximum(t, 0.0)

    lt_ref = bf16_thought(obs_local)
    gt_ref = bf16_thought(obs_global)
    x_cat = jnp.concatenate([lt_ref, gt_ref], axis=1).astype(jnp.bfloat16)
    adv = jnp.tanh(jnp.dot(x_cat, raw["wa"].astype(jnp.bfloat16),
                           preferred_element_type=jnp.float32) + raw["ba"])
    val = jnp.dot(gt_ref.astype(jnp.bfloat16), raw["wc"].astype(jnp.bfloat16),
                  preferred_element_type=jnp.float32) + raw["bc"]
    ref = val + adv

    # full-f32 semantic reference (loose tolerance: only checks module semantics)
    def f32_thought(o):
        h = jnp.maximum(o @ raw["w1"] + raw["b1"], 0.0)
        return jnp.maximum(h @ raw["w2"] + raw["b2"], 0.0)
    lt32, gt32 = f32_thought(obs_local), f32_thought(obs_global)
    ref32 = (gt32 @ raw["wc"] + raw["bc"]) + jnp.tanh(
        jnp.concatenate([lt32, gt32], axis=1) @ raw["wa"] + raw["ba"])

    assert out.shape == (B, ACTIONS)
    assert jnp.allclose(out, ref, atol=1e-3, rtol=1e-3), "fused kernel mismatch"
    assert jnp.allclose(out, ref32, atol=5e-2, rtol=5e-2), "semantic drift vs f32"

    # module-API path (thoughts produced / supplied separately) must agree too
    lt_k = get_thought(obs_local, params)
    gt_k = get_thought(obs_global, params)
    out2 = jax.block_until_ready(dqn_forward(lt_k, gt_k, params))
    assert jnp.allclose(out2, ref, atol=1e-3, rtol=1e-3), "unfused path mismatch"

    print("KERNEL_OK")
</pallas_src>

<mosaic_0001>
module attributes {stable_mosaic.version = 11 : i64} {
  func.func @_fused_agent_kernel(%arg0: i32, %arg1: memref<16x16xbf16, #tpu.memory_space<vmem>>, %arg2: memref<16x64xbf16, #tpu.memory_space<vmem>>, %arg3: memref<1x64xf32, #tpu.memory_space<vmem>>, %arg4: memref<64x32xbf16, #tpu.memory_space<vmem>>, %arg5: memref<1x32xf32, #tpu.memory_space<vmem>>, %arg6: memref<64x128xbf16, #tpu.memory_space<vmem>>, %arg7: memref<1x128xf32, #tpu.memory_space<vmem>>, %arg8: memref<8x128xf32, #tpu.memory_space<vmem>>) attributes {dimension_semantics = [#tpu.dimension_semantics<parallel>], iteration_bounds = array<i64: 2>, scalar_prefetch = 0 : i64, scratch_operands = 0 : i64, tpu.core_type = #tpu.core_type<tc>, window_params = [{transform_indices = @transform_0, window_bounds = array<i64: 16, 16>}, {pipeline_mode = #tpu.pipeline_mode<synchronous>, transform_indices = @transform_1, window_bounds = array<i64: 16, 64>}, {pipeline_mode = #tpu.pipeline_mode<synchronous>, transform_indices = @transform_2, window_bounds = array<i64: 1, 64>}, {pipeline_mode = #tpu.pipeline_mode<synchronous>, transform_indices = @transform_3, window_bounds = array<i64: 64, 32>}, {pipeline_mode = #tpu.pipeline_mode<synchronous>, transform_indices = @transform_4, window_bounds = array<i64: 1, 32>}, {pipeline_mode = #tpu.pipeline_mode<synchronous>, transform_indices = @transform_5, window_bounds = array<i64: 64, 128>}, {pipeline_mode = #tpu.pipeline_mode<synchronous>, transform_indices = @transform_6, window_bounds = array<i64: 1, 128>}, {transform_indices = @transform_7, window_bounds = array<i64: 8, 128>}]} {
    %c0 = arith.constant 0 : index
    %c0_0 = arith.constant 0 : index
    %0 = vector.load %arg1[%c0, %c0_0] : memref<16x16xbf16, #tpu.memory_space<vmem>>, vector<16x16xbf16>
    %c0_1 = arith.constant 0 : index
    %c0_2 = arith.constant 0 : index
    %1 = vector.load %arg2[%c0_1, %c0_2] : memref<16x64xbf16, #tpu.memory_space<vmem>>, vector<16x64xbf16>
    %cst = arith.constant dense<0.000000e+00> : vector<16x64xf32>
    %2 = tpu.matmul %0, %1, %cst {dimension_numbers = #tpu.dot_dimension_numbers<[1], [0], [0], [1], [0, 0, 1, 1], [], []>} : vector<16x16xbf16>, vector<16x64xbf16>, vector<16x64xf32> -> vector<16x64xf32>
    %c0_3 = arith.constant 0 : index
    %c0_4 = arith.constant 0 : index
    %3 = vector.load %arg3[%c0_3, %c0_4] : memref<1x64xf32, #tpu.memory_space<vmem>>, vector<1x64xf32>
    %4 = vector.broadcast %3 : vector<1x64xf32> to vector<16x64xf32>
    %5 = arith.addf %2, %4 : vector<16x64xf32>
    %cst_5 = arith.constant 0.000000e+00 : f32
    %6 = vector.broadcast %cst_5 : f32 to vector<16x64xf32>
    %7 = arith.maximumf %5, %6 : vector<16x64xf32>
    %8 = arith.truncf %7 : vector<16x64xf32> to vector<16x64xbf16>
    %c0_6 = arith.constant 0 : index
    %c0_7 = arith.constant 0 : index
    %9 = vector.load %arg4[%c0_6, %c0_7] : memref<64x32xbf16, #tpu.memory_space<vmem>>, vector<64x32xbf16>
    %cst_8 = arith.constant dense<0.000000e+00> : vector<16x32xf32>
    %10 = tpu.matmul %8, %9, %cst_8 {dimension_numbers = #tpu.dot_dimension_numbers<[1], [0], [0], [1], [0, 0, 1, 1], [], []>} : vector<16x64xbf16>, vector<64x32xbf16>, vector<16x32xf32> -> vector<16x32xf32>
    %c0_9 = arith.constant 0 : index
    %c0_10 = arith.constant 0 : index
    %11 = vector.load %arg5[%c0_9, %c0_10] : memref<1x32xf32, #tpu.memory_space<vmem>>, vector<1x32xf32>
    %12 = vector.broadcast %11 : vector<1x32xf32> to vector<16x32xf32>
    %13 = arith.addf %10, %12 : vector<16x32xf32>
    %cst_11 = arith.constant 0.000000e+00 : f32
    %14 = vector.broadcast %cst_11 : f32 to vector<16x32xf32>
    %15 = arith.maximumf %13, %14 : vector<16x32xf32>
    %16 = arith.truncf %15 : vector<16x32xf32> to vector<16x32xbf16>
    %17 = vector.extract_strided_slice %16 {offsets = [0, 0], sizes = [8, 32], strides = [1, 1]} : vector<16x32xbf16> to vector<8x32xbf16>
    %18 = vector.extract_strided_slice %16 {offsets = [8, 0], sizes = [8, 32], strides = [1, 1]} : vector<16x32xbf16> to vector<8x32xbf16>
    %c0_12 = arith.constant 0 : index
    %c0_13 = arith.constant 0 : index
    %19 = vector.load %arg6[%c0_12, %c0_13] : memref<64x128xbf16, #tpu.memory_space<vmem>>, vector<32x128xbf16>
    %cst_14 = arith.constant dense<0.000000e+00> : vector<8x128xf32>
    %20 = tpu.matmul %17, %19, %cst_14 {dimension_numbers = #tpu.dot_dimension_numbers<[1], [0], [0], [1], [0, 0, 1, 1], [], []>} : vector<8x32xbf16>, vector<32x128xbf16>, vector<8x128xf32> -> vector<8x128xf32>
    %c32 = arith.constant 32 : index
    %c0_15 = arith.constant 0 : index
    %21 = vector.load %arg6[%c32, %c0_15] : memref<64x128xbf16, #tpu.memory_space<vmem>>, vector<32x128xbf16>
    %cst_16 = arith.constant dense<0.000000e+00> : vector<8x128xf32>
    %22 = tpu.matmul %18, %21, %cst_16 {dimension_numbers = #tpu.dot_dimension_numbers<[1], [0], [0], [1], [0, 0, 1, 1], [], []>} : vector<8x32xbf16>, vector<32x128xbf16>, vector<8x128xf32> -> vector<8x128xf32>
    %23 = arith.addf %20, %22 : vector<8x128xf32>
    %c0_17 = arith.constant 0 : index
    %c0_18 = arith.constant 0 : index
    %24 = vector.load %arg7[%c0_17, %c0_18] : memref<1x128xf32, #tpu.memory_space<vmem>>, vector<1x128xf32>
    %25 = vector.broadcast %24 : vector<1x128xf32> to vector<8x128xf32>
    %26 = arith.addf %23, %25 : vector<8x128xf32>
    %27 = vector.extract_strided_slice %26 {offsets = [0, 4], sizes = [8, 1], strides = [1, 1]} : vector<8x128xf32> to vector<8x1xf32>
    %28 = math.tanh %26 : vector<8x128xf32>
    %29 = vector.broadcast %27 : vector<8x1xf32> to vector<8x128xf32>
    %30 = arith.addf %28, %29 : vector<8x128xf32>
    %c0_19 = arith.constant 0 : index
    %c0_20 = arith.constant 0 : index
    %31 = vector.load %arg8[%c0_19, %c0_20] : memref<8x128xf32, #tpu.memory_space<vmem>>, vector<8x128xf32>
    tpu.vector_store %arg8[%c0_19, %c0_20], %30 {strides = array<i32>} : memref<8x128xf32, #tpu.memory_space<vmem>>, vector<8x128xf32>,
    return
  }
  func.func @transform_0(%arg0: i32) -> (i32, i32) {
    %c0_i32 = arith.constant 0 : i32
    %c0_i32_0 = arith.constant 0 : i32
    return %arg0, %c0_i32 : i32, i32
  }
  func.func @transform_1(%arg0: i32) -> (i32, i32) {
    %c0_i32 = arith.constant 0 : i32
    %c0_i32_0 = arith.constant 0 : i32
    %c0_i32_1 = arith.constant 0 : i32
    return %c0_i32, %c0_i32_0 : i32, i32
  }
  func.func @transform_2(%arg0: i32) -> (i32, i32) {
    %c0_i32 = arith.constant 0 : i32
    %c0_i32_0 = arith.constant 0 : i32
    %c0_i32_1 = arith.constant 0 : i32
    return %c0_i32, %c0_i32_0 : i32, i32
  }
  func.func @transform_3(%arg0: i32) -> (i32, i32) {
    %c0_i32 = arith.constant 0 : i32
    %c0_i32_0 = arith.constant 0 : i32
    %c0_i32_1 = arith.constant 0 : i32
    return %c0_i32, %c0_i32_0 : i32, i32
  }
  func.func @transform_4(%arg0: i32) -> (i32, i32) {
    %c0_i32 = arith.constant 0 : i32
    %c0_i32_0 = arith.constant 0 : i32
    %c0_i32_1 = arith.constant 0 : i32
    return %c0_i32, %c0_i32_0 : i32, i32
  }
  func.func @transform_5(%arg0: i32) -> (i32, i32) {
    %c0_i32 = arith.constant 0 : i32
    %c0_i32_0 = arith.constant 0 : i32
    %c0_i32_1 = arith.constant 0 : i32
    return %c0_i32, %c0_i32_0 : i32, i32
  }
  func.func @transform_6(%arg0: i32) -> (i32, i32) {
    %c0_i32 = arith.constant 0 : i32
    %c0_i32_0 = arith.constant 0 : i32
    %c0_i32_1 = arith.constant 0 : i32
    return %c0_i32, %c0_i32_0 : i32, i32
  }
  func.func @transform_7(%arg0: i32) -> (i32, i32) {
    %c0_i32 = arith.constant 0 : i32
    %c0_i32_0 = arith.constant 0 : i32
    return %arg0, %c0_i32 : i32, i32
  }
}

</mosaic_0001>

<llo_original>
// kernel: tpu_custom_call.1
$region0: #{tpu_custom_call.1}
  #allocation0 [shape = 'u32[]', space=smem, size = 0x4, offset = 0x4, fixed_abs, tag = 'smem constant byte address 0x4 - core index']
  #allocation1 [shape = 'u32[144,128]{1,0:T(1,128)}', space=vmem, size = 0x12000, scoped, tag = 'internal scratch']
  %s0 = inlined_call_operand.vmem [shape: bf16[32,16], index: 0, kind: input, shape index: {}]
  %s1 = inlined_call_operand.vmem [shape: bf16[16,64], index: 1, kind: input, shape index: {}]
  %s2 = inlined_call_operand.vmem [shape: f32[1,64], index: 2, kind: input, shape index: {}]
  %s3 = inlined_call_operand.vmem [shape: bf16[64,32], index: 3, kind: input, shape index: {}]
  %s4 = inlined_call_operand.vmem [shape: f32[1,32], index: 4, kind: input, shape index: {}]
  %s5 = inlined_call_operand.vmem [shape: bf16[64,128], index: 5, kind: input, shape index: {}]
  %s6 = inlined_call_operand.vmem [shape: f32[1,128], index: 6, kind: input, shape index: {}]
  %s7 = inlined_call_operand.hbm [shape: f32[16,128], index: 7, kind: output, shape index: {}]
  %s8 = sld [smem:[#allocation0]]
  $region61: #{tpu_custom_call.1} parent=0
    _
  %s10 = ssub.s32 1, %s8
  %s11 = scalar_select 0, %s10, %s8
  $region1: #{tpu_custom_call.1} parent=0
    #allocation2 [shape = 'u8[8192]{0}', space=vmem, size = 0x2000, scoped, tag = 'output window, operand 0']
    #allocation3 [shape = 's32[2]{0}', space=sflag, size = 0x8, scoped, tag = 'scoped memory for tpu_custom_call.1']
    %12 = vsyncpa [#allocation3], 0
    %s13 = scalar_lea.sflag [#allocation3], 1
    %14 = vsyncpa %s13, 0
    loop: start=0, step=1, limit=4
    $region2: #{tpu_custom_call.1} parent=1 // loop_pre_header
      _
    $region3: #{tpu_custom_call.1} parent=1 // loop_header
      %s16 = sphi 0, %s20
      %p17 = scmp.ge.s32.totalorder %s16, 4
      %s26 = sphi 0, %s28
      %s29 = sphi 0, %s26
      %s30 = sphi 0, %s29
      %s46 = sphi 0, %s30
      %s50 = sphi 0, %s50
      %s52 = sphi 0, %s50
      %s53 = sphi 0, %s52
      %s67 = sphi 0, %s53
      %s71 = sphi 0, %s71
      %s73 = sphi 0, %s71
      %s74 = sphi 0, %s73
      %s88 = sphi 0, %s74
      %s92 = sphi 0, %s92
      %s94 = sphi 0, %s92
      %s95 = sphi 0, %s94
      %s109 = sphi 0, %s95
      %s113 = sphi 0, %s113
      %s115 = sphi 0, %s113
      %s116 = sphi 0, %s115
      %s130 = sphi 0, %s116
      %s134 = sphi 0, %s134
      %s136 = sphi 0, %s134
      %s137 = sphi 0, %s136
      %s151 = sphi 0, %s137
      %s155 = sphi 0, %s155
      %s157 = sphi 0, %s155
      %s158 = sphi 0, %s157
      %s172 = sphi 0, %s158
      %s178 = sphi 0, %s180
      %s181 = sphi 0, %s178
      %s182 = sphi 0, %s181
      %s198 = sphi 0, %s182
    $region4: #{tpu_custom_call.1} parent=1 // loop_header_branch
      %19 = sbr.rel (%p17) target = $region8
    $region5: #{tpu_custom_call.1} parent=1 // loop_body
      %s21 = ssub.s32 %s16, 1
      %s22 = ssub.s32 %s16, 2
      %s23 = sadd.s32 %s16, 1
      %s24 = ssub.s32 %s16, %s23
      %p25 = scmp.eq.s32.totalorder %s24, 0
      %s27 = sadd.s32 %s26, 1
      %s28 = scalar_select %p25, %s26, %s27
      %p31 = pneg %p25
      %p32 = scmp.eq.s32.totalorder %s16, 1
      %p33 = por %p31, %p32
      %p34 = scmp.ne.s32.totalorder %s26, %s29
      %p35 = scmp.eq.s32.totalorder %s16, 0
      %p36 = por %p34, %p35
      %p37 = scmp.ne.s32.totalorder %s26, %s29
      %p38 = scmp.eq.s32.totalorder %s21, 1
      %p39 = por %p37, %p38
      %p40 = scmp.ne.s32.totalorder %s29, %s30
      %p41 = scmp.eq.s32.totalorder %s21, 0
      %p42 = por %p40, %p41
      %p43 = scmp.ne.s32.totalorder %s29, %s30
      %p44 = scmp.eq.s32.totalorder %s22, 1
      %p45 = por %p43, %p44
      %p47 = scmp.ne.s32.totalorder %s30, %s46
      %p48 = scmp.eq.s32.totalorder %s22, 0
      %p49 = por %p47, %p48
      %s51 = sadd.s32 %s50, 1
      %p54 = scmp.eq.s32.totalorder %s16, 1
      %p55 = scmp.ne.s32.totalorder %s50, %s52
      %p56 = scmp.eq.s32.totalorder %s16, 0
      %p57 = por %p55, %p56
      %p58 = scmp.ne.s32.totalorder %s50, %s52
      %p59 = scmp.eq.s32.totalorder %s21, 1
      %p60 = por %p58, %p59
      %p61 = scmp.ne.s32.totalorder %s52, %s53
      %p62 = scmp.eq.s32.totalorder %s21, 0
      %p63 = por %p61, %p62
      %p64 = scmp.ne.s32.totalorder %s52, %s53
      %p65 = scmp.eq.s32.totalorder %s22, 1
      %p66 = por %p64, %p65
      %p68 = scmp.ne.s32.totalorder %s53, %s67
      %p69 = scmp.eq.s32.totalorder %s22, 0
      %p70 = por %p68, %p69
      %s72 = sadd.s32 %s71, 1
      %p75 = scmp.eq.s32.totalorder %s16, 1
      %p76 = scmp.ne.s32.totalorder %s71, %s73
      %p77 = scmp.eq.s32.totalorder %s16, 0
      %p78 = por %p76, %p77
      %p79 = scmp.ne.s32.totalorder %s71, %s73
      %p80 = scmp.eq.s32.totalorder %s21, 1
      %p81 = por %p79, %p80
      %p82 = scmp.ne.s32.totalorder %s73, %s74
      %p83 = scmp.eq.s32.totalorder %s21, 0
      %p84 = por %p82, %p83
      %p85 = scmp.ne.s32.totalorder %s73, %s74
      %p86 = scmp.eq.s32.totalorder %s22, 1
      %p87 = por %p85, %p86
      %p89 = scmp.ne.s32.totalorder %s74, %s88
      %p90 = scmp.eq.s32.totalorder %s22, 0
      %p91 = por %p89, %p90
      %s93 = sadd.s32 %s92, 1
      %p96 = scmp.eq.s32.totalorder %s16, 1
      %p97 = scmp.ne.s32.totalorder %s92, %s94
      %p98 = scmp.eq.s32.totalorder %s16, 0
      %p99 = por %p97, %p98
      %p100 = scmp.ne.s32.totalorder %s92, %s94
      %p101 = scmp.eq.s32.totalorder %s21, 1
      %p102 = por %p100, %p101
      %p103 = scmp.ne.s32.totalorder %s94, %s95
      %p104 = scmp.eq.s32.totalorder %s21, 0
      %p105 = por %p103, %p104
      %p106 = scmp.ne.s32.totalorder %s94, %s95
      %p107 = scmp.eq.s32.totalorder %s22, 1
      %p108 = por %p106, %p107
      %p110 = scmp.ne.s32.totalorder %s95, %s109
      %p111 = scmp.eq.s32.totalorder %s22, 0
      %p112 = por %p110, %p111
      %s114 = sadd.s32 %s113, 1
      %p117 = scmp.eq.s32.totalorder %s16, 1
      %p118 = scmp.ne.s32.totalorder %s113, %s115
      %p119 = scmp.eq.s32.totalorder %s16, 0
      %p120 = por %p118, %p119
      %p121 = scmp.ne.s32.totalorder %s113, %s115
      %p122 = scmp.eq.s32.totalorder %s21, 1
      %p123 = por %p121, %p122
      %p124 = scmp.ne.s32.totalorder %s115, %s116
      %p125 = scmp.eq.s32.totalorder %s21, 0
      %p126 = por %p124, %p125
      %p127 = scmp.ne.s32.totalorder %s115, %s116
      %p128 = scmp.eq.s32.totalorder %s22, 1
      %p129 = por %p127, %p128
      %p131 = scmp.ne.s32.totalorder %s116, %s130
      %p132 = scmp.eq.s32.totalorder %s22, 0
      %p133 = por %p131, %p132
      %s135 = sadd.s32 %s134, 1
      %p138 = scmp.eq.s32.totalorder %s16, 1
      %p139 = scmp.ne.s32.totalorder %s134, %s136
      %p140 = scmp.eq.s32.totalorder %s16, 0
      %p141 = por %p139, %p140
      %p142 = scmp.ne.s32.totalorder %s134, %s136
      %p143 = scmp.eq.s32.totalorder %s21, 1
      %p144 = por %p142, %p143
      %p145 = scmp.ne.s32.totalorder %s136, %s137
      %p146 = scmp.eq.s32.totalorder %s21, 0
      %p147 = por %p145, %p146
      %p148 = scmp.ne.s32.totalorder %s136, %s137
      %p149 = scmp.eq.s32.totalorder %s22, 1
      %p150 = por %p148, %p149
      %p152 = scmp.ne.s32.totalorder %s137, %s151
      %p153 = scmp.eq.s32.totalorder %s22, 0
      %p154 = por %p152, %p153
      %s156 = sadd.s32 %s155, 1
      %p159 = scmp.eq.s32.totalorder %s16, 1
      %p160 = scmp.ne.s32.totalorder %s155, %s157
      %p161 = scmp.eq.s32.totalorder %s16, 0
      %p162 = por %p160, %p161
      %p163 = scmp.ne.s32.totalorder %s155, %s157
      %p164 = scmp.eq.s32.totalorder %s21, 1
      %p165 = por %p163, %p164
      %p166 = scmp.ne.s32.totalorder %s157, %s158
      %p167 = scmp.eq.s32.totalorder %s21, 0
      %p168 = por %p166, %p167
      %p169 = scmp.ne.s32.totalorder %s157, %s158
      %p170 = scmp.eq.s32.totalorder %s22, 1
      %p171 = por %p169, %p170
      %p173 = scmp.ne.s32.totalorder %s158, %s172
      %p174 = scmp.eq.s32.totalorder %s22, 0
      %p175 = por %p173, %p174
      %s176 = ssub.s32 %s16, %s23
      %p177 = scmp.eq.s32.totalorder %s176, 0
      %s179 = sadd.s32 %s178, 1
      %s180 = scalar_select %p177, %s178, %s179
      %p183 = pneg %p177
      %p184 = scmp.eq.s32.totalorder %s16, 1
      %p185 = por %p183, %p184
      %p186 = scmp.ne.s32.totalorder %s178, %s181
      %p187 = scmp.eq.s32.totalorder %s16, 0
      %p188 = por %p186, %p187
      %p189 = scmp.ne.s32.totalorder %s178, %s181
      %p190 = scmp.eq.s32.totalorder %s21, 1
      %p191 = por %p189, %p190
      %p192 = scmp.ne.s32.totalorder %s181, %s182
      %p193 = scmp.eq.s32.totalorder %s21, 0
      %p194 = por %p192, %p193
      %p195 = scmp.ne.s32.totalorder %s181, %s182
      %p196 = scmp.eq.s32.totalorder %s22, 1
      %p197 = por %p195, %p196
      %p199 = scmp.ne.s32.totalorder %s182, %s198
      %p200 = scmp.eq.s32.totalorder %s22, 0
      %p201 = por %p199, %p200
      %p202 = scmp.le.s32.totalorder 1, %s16
      %p203 = scmp.lt.s32.totalorder %s16, 3
      %p204 = pnand %p202, %p203
      %p205 = pneg %p204
      // Predicated region
      $region9: #{tpu_custom_call.1} parent=5 // pred_check
        _
      $region10: #{tpu_custom_call.1} parent=5 // pred_check_branch
        %207 = sbr.rel (%p204) target = $region12
      $region11: #{tpu_custom_call.1} parent=5 // pred_region
        %s208 = ssub.s32 %s16, 1
        // Predicated region
        $region13: #{tpu_custom_call.1} parent=11 // pred_check
          %p209 = pneg %p63
        $region14: #{tpu_custom_call.1} parent=11 // pred_check_branch
          %211 = sbr.rel (%p209) target = $region16
        $region15: #{tpu_custom_call.1} parent=11 // pred_region
          _
        $region16: #{tpu_custom_call.1} parent=11 // pred_fallthru
          _
        // Predicated region
        $region17: #{tpu_custom_call.1} parent=11 // pred_check
          %p212 = pneg %p84
        $region18: #{tpu_custom_call.1} parent=11 // pred_check_branch
          %214 = sbr.rel (%p212) target = $region20
        $region19: #{tpu_custom_call.1} parent=11 // pred_region
          _
        $region20: #{tpu_custom_call.1} parent=11 // pred_fallthru
          _
        // Predicated region
        $region21: #{tpu_custom_call.1} parent=11 // pred_check
          %p215 = pneg %p105
        $region22: #{tpu_custom_call.1} parent=11 // pred_check_branch
          %217 = sbr.rel (%p215) target = $region24
        $region23: #{tpu_custom_call.1} parent=11 // pred_region
          _
        $region24: #{tpu_custom_call.1} parent=11 // pred_fallthru
          _
        // Predicated region
        $region25: #{tpu_custom_call.1} parent=11 // pred_check
          %p218 = pneg %p126
        $region26: #{tpu_custom_call.1} parent=11 // pred_check_branch
          %220 = sbr.rel (%p218) target = $region28
        $region27: #{tpu_custom_call.1} parent=11 // pred_region
          _
        $region28: #{tpu_custom_call.1} parent=11 // pred_fallthru
          _
        // Predicated region
        $region29: #{tpu_custom_call.1} parent=11 // pred_check
          %p221 = pneg %p147
        $region30: #{tpu_custom_call.1} parent=11 // pred_check_branch
          %223 = sbr.rel (%p221) target = $region32
        $region31: #{tpu_custom_call.1} parent=11 // pred_region
          _
        $region32: #{tpu_custom_call.1} parent=11 // pred_fallthru
          _
        // Predicated region
        $region33: #{tpu_custom_call.1} parent=11 // pred_check
          %p224 = pneg %p168
        $region34: #{tpu_custom_call.1} parent=11 // pred_check_branch
          %226 = sbr.rel (%p224) target = $region36
        $region35: #{tpu_custom_call.1} parent=11 // pred_region
          _
        $region36: #{tpu_custom_call.1} parent=11 // pred_fallthru
          _
      $region12: #{tpu_custom_call.1} parent=5 // pred_fallthru
        _
      %p227 = scmp.lt.s32.totalorder %s16, 2
      // Predicated region
      $region37: #{tpu_custom_call.1} parent=5 // pred_check
        %p228 = pneg %p227
      $region38: #{tpu_custom_call.1} parent=5 // pred_check_branch
        %230 = sbr.rel (%p228) target = $region40
      $region39: #{tpu_custom_call.1} parent=5 // pred_region
        // Predicated region
        $region41: #{tpu_custom_call.1} parent=39 // pred_check
          %p231 = pneg %p36
        $region42: #{tpu_custom_call.1} parent=39 // pred_check_branch
          %233 = sbr.rel (%p231) target = $region44
        $region43: #{tpu_custom_call.1} parent=39 // pred_region
          %s234 = smul.u32 2, %s16
          %p235 = scmp.lt.s32.totalorder %s234, 3
          %s236 = scalar_select %p235, %s234, 3
          %s237 = smul.addr %s236, 4
          %s238 = scalar_lea.vmem %s0, %s237
          %s239 = smul.u32 2, %s16
        $region44: #{tpu_custom_call.1} parent=39 // pred_fallthru
          _
      $region40: #{tpu_custom_call.1} parent=5 // pred_fallthru
        _
      %p240 = scmp.le.s32.totalorder 1, %s16
      %p241 = scmp.lt.s32.totalorder %s16, 3
      %p242 = pnand %p240, %p241
      %p243 = pneg %p242
      // Predicated region
      $region45: #{tpu_custom_call.1} parent=5 // pred_check
        _
      $region46: #{tpu_custom_call.1} parent=5 // pred_check_branch
        %245 = sbr.rel (%p242) target = $region48
      $region47: #{tpu_custom_call.1} parent=5 // pred_region
        %s246 = ssub.s32 %s16, 1
        %s247 = smul.u32 2, %s21
        %p248 = scmp.lt.s32.totalorder %s247, 3
        %s249 = scalar_select %p248, %s247, 3
        %s250 = smul.addr %s249, 4
        %s251 = scalar_lea.vmem %s0, %s250
        %p252 = pneg %p42
        %p253 = pneg %p39
        %p254 = pneg %p63
        %p255 = pneg %p60
        %p256 = pneg %p84
        %p257 = pneg %p81
        %p258 = pneg %p105
        %p259 = pneg %p102
        %p260 = pneg %p126
        %p261 = pneg %p123
        %p262 = pneg %p147
        %p263 = pneg %p144
        %p264 = pneg %p168
        %p265 = pneg %p165
        %p266 = pneg %p194
        %p267 = pneg %p191
        %s268 = sand.u32 %s181, 1
        %s269 = scalar_lea.sflag [#allocation3], %s268
        %s270 = sand.u32 %s181, 1
        %s271 = smul.addr %s270, 8
        %s272 = scalar_lea.vmem [#allocation2], %s271
        %s273 = smul.u32 2, %s21
        %p274 = scmp.lt.s32.totalorder %s273, 3
        %s275 = scalar_select %p274, %s273, 3
        %s276 = smul.addr %s275, 4
        %s277 = scalar_lea.vmem %s0, %s276
        %s278 = smul.u32 2, %s21
        %v280 = vld [vmem:[%s277] sm:$0xf]
        %v281 = vld [vmem:[%s277 + $0x4] sm:$0xf]
        %v282 = vld [vmem:[%s1] sm:$0xf]
        %v283 = vld [vmem:[%s1 + $0x4] sm:$0xf]
        %v284 = vld [vmem:[%s2] sm:$0x1]
        %v286 = vlaneseq
        %v287 = vshrl.u32 %v286, 7
        %v288 = vsub.s32 0, %v287
        %v289 = vrot.slane %v284, %v288
        %v293 = vunpack.c.l.b16 %v280
        %v294 = vunpack.c.l.b16 %v281
        %v295 = vpack.c.b16 %v294, %v293
        %v298 = vunpack.c.l.b16 %v282
        %v299 = vunpack.c.l.b16 %v283
        %v300 = vpack.c.b16 %v299, %v298
        %vm302 = vcmask 130048
        %v304 = vsel %vm302, %v295, 0
        %306 = vmatprep.subr.bf16.mxu0 0
        %307 = vmatpush1.bf16.msra.mxu0 %v300
        %308 = vmatprep.subr.bf16.mxu0 0
        %309 = vmatpush1.bf16.msra.mxu0 0
        %310 = vmatprep.subr.bf16.mxu0 0
        %311 = vmatpush1.bf16.msra.mxu0 0
        %312 = vmatprep.subr.bf16.mxu0 0
        %313 = vmatpush1.bf16.msra.mxu0 0
        %314 = vmatprep.subr.bf16.mxu0 0
        %315 = vmatpush1.bf16.msra.mxu0 0
        %316 = vmatprep.subr.bf16.mxu0 0
        %317 = vmatpush1.bf16.msra.mxu0 0
        %318 = vmatprep.subr.bf16.mxu0 0
        %319 = vmatpush1.bf16.msra.mxu0 0
        %320 = vmatprep.subr.bf16.mxu0 0
        %321 = vmatpush1.bf16.msra.mxu0 0
        %322 = vmatprep.subr.bf16.mxu0 0
        %323 = vmatpush1.bf16.msra.mxu0 0
        %324 = vmatprep.subr.bf16.mxu0 0
        %325 = vmatpush1.bf16.msra.mxu0 0
        %326 = vmatprep.subr.bf16.mxu0 0
        %327 = vmatpush1.bf16.msra.mxu0 0
        %328 = vmatprep.subr.bf16.mxu0 0
        %329 = vmatpush1.bf16.msra.mxu0 0
        %330 = vmatprep.subr.bf16.mxu0 0
        %331 = vmatpush1.bf16.msra.mxu0 0
        %332 = vmatprep.subr.bf16.mxu0 0
        %333 = vmatpush1.bf16.msra.mxu0 0
        %334 = vmatprep.subr.bf16.mxu0 0
        %335 = vmatpush1.bf16.msra.mxu0 0
        %336 = vmatprep.subr.bf16.mxu0 0
        %337 = vmatpush1.bf16.msra.mxu0 0
        %338 = vmatprep.mubr.bf16.mxu0 0
        %339 = vmatmul.mubr.bf16.gmra.mrb[0].mxu0 %v304
        %v340 = vpop.f32.mrb[0].mxu0
        %v341 = vadd.f32 %v289, %v340
        %v342 = vpop.f32.mrb[0].mxu0
        %v343 = vpop.f32.mrb[0].mxu0
        %v344 = vadd.f32 %v289, %v343
        %v345 = vpop.f32.mrb[0].mxu0
        %346 = vdwg.mxu0
        %v347 = vmax.f32 %v341, 0.0
        %v348 = vmax.f32 %v344, 0.0
        %v349 = vpack.c.bf16 %v348, %v347
        %v350 = vld [vmem:[%s3] sm:$0xf]
        %v351 = vld [vmem:[%s3 + $0x4] sm:$0xf]
        %v352 = vld [vmem:[%s3 + $0x8] sm:$0xf]
        %v353 = vld [vmem:[%s3 + $0xc] sm:$0xf]
        %v354 = vld [vmem:[%s3 + $0x10] sm:$0xf]
        %v355 = vld [vmem:[%s3 + $0x14] sm:$0xf]
        %v356 = vld [vmem:[%s3 + $0x18] sm:$0xf]
        %v357 = vld [vmem:[%s3 + $0x1c] sm:$0xf]
        %v358 = vld [vmem:[%s4] sm:$0x1]
        %v360 = vlaneseq
        %v361 = vshrl.u32 %v360, 7
        %v362 = vsub.s32 0, %v361
        %v363 = vrot.slane %v358, %v362
        %v373 = vunpack.c.l.b16 %v350
        %v374 = vunpack.c.l.b16 %v351
        %v375 = vunpack.c.l.b16 %v352
        %v376 = vunpack.c.l.b16 %v353
        %v377 = vunpack.c.l.b16 %v354
        %v378 = vunpack.c.l.b16 %v355
        %v379 = vunpack.c.l.b16 %v356
        %v380 = vunpack.c.l.b16 %v357
        %v381 = vpack.c.b16 %v374, %v373
        %v382 = vpack.c.b16 %v376, %v375
        %v383 = vpack.c.b16 %v378, %v377
        %v384 = vpack.c.b16 %v380, %v379
        %vm389 = vcmask 523264
        %v391 = vsel %vm389, %v349, 0
        %393 = vmatprep.subr.bf16.mxu0 0
        %394 = vmatpush1.bf16.msra.mxu0 %v381
        %395 = vmatprep.subr.bf16.mxu0 0
        %396 = vmatpush1.bf16.msra.mxu0 %v382
        %397 = vmatprep.subr.bf16.mxu0 0
        %398 = vmatpush1.bf16.msra.mxu0 %v383
        %399 = vmatprep.subr.bf16.mxu0 0
        %400 = vmatpush1.bf16.msra.mxu0 %v384
        %401 = vmatprep.subr.bf16.mxu0 0
        %402 = vmatpush1.bf16.msra.mxu0 0
        %403 = vmatprep.subr.bf16.mxu0 0
        %404 = vmatpush1.bf16.msra.mxu0 0
        %405 = vmatprep.subr.bf16.mxu0 0
        %406 = vmatpush1.bf16.msra.mxu0 0
        %407 = vmatprep.subr.bf16.mxu0 0
        %408 = vmatpush1.bf16.msra.mxu0 0
        %409 = vmatprep.subr.bf16.mxu0 0
        %410 = vmatpush1.bf16.msra.mxu0 0
        %411 = vmatprep.subr.bf16.mxu0 0
        %412 = vmatpush1.bf16.msra.mxu0 0
        %413 = vmatprep.subr.bf16.mxu0 0
        %414 = vmatpush1.bf16.msra.mxu0 0
        %415 = vmatprep.subr.bf16.mxu0 0
        %416 = vmatpush1.bf16.msra.mxu0 0
        %417 = vmatprep.subr.bf16.mxu0 0
        %418 = vmatpush1.bf16.msra.mxu0 0
        %419 = vmatprep.subr.bf16.mxu0 0
        %420 = vmatpush1.bf16.msra.mxu0 0
        %421 = vmatprep.subr.bf16.mxu0 0
        %422 = vmatpush1.bf16.msra.mxu0 0
        %423 = vmatprep.subr.bf16.mxu0 0
        %424 = vmatpush1.bf16.msra.mxu0 0
        %425 = vmatprep.mubr.bf16.mxu0 0
        %426 = vmatmul.mubr.bf16.gmra.mrb[0].mxu0 %v391
        %v427 = vpop.f32.mrb[0].mxu0
        %v428 = vadd.f32 %v363, %v427
        %v429 = vpop.f32.mrb[0].mxu0
        %v430 = vpop.f32.mrb[0].mxu0
        %v431 = vadd.f32 %v363, %v430
        %v432 = vpop.f32.mrb[0].mxu0
        %433 = vdwg.mxu0
        %v434 = vmax.f32 %v428, 0.0
        %v435 = vmax.f32 %v431, 0.0
        %v436 = vpack.c.bf16 %v435, %v434
        %v437 = vld [vmem:[%s5] sm:$0xf]
        %v438 = vld [vmem:[%s5 + $0x4] sm:$0xf]
        %v439 = vld [vmem:[%s5 + $0x8] sm:$0xf]
        %v440 = vld [vmem:[%s5 + $0xc] sm:$0xf]
        %v441 = vld [vmem:[%s5 + $0x10] sm:$0xf]
        %v442 = vld [vmem:[%s5 + $0x14] sm:$0xf]
        %v443 = vld [vmem:[%s5 + $0x18] sm:$0xf]
        %v444 = vld [vmem:[%s5 + $0x1c] sm:$0xf]
        %v446 = vrot.slane %v436, 4
        %v451 = vunpack.c.l.b16 %v441
        %v452 = vunpack.c.l.b16 %v442
        %v453 = vunpack.c.l.b16 %v443
        %v454 = vunpack.c.l.b16 %v444
        %v455 = vpack.c.b16 %v452, %v451
        %v456 = vpack.c.b16 %v454, %v453
        %vm459 = vcmask 261120
        %v461 = vsel %vm459, %v446, 0
        %463 = vmatprep.subr.bf16.mxu0 0
        %464 = vmatpush1.bf16.msra.mxu0 %v455
        %465 = vmatprep.subr.bf16.mxu0 0
        %466 = vmatpush1.bf16.msra.mxu0 %v456
        %467 = vmatprep.subr.bf16.mxu0 0
        %468 = vmatpush1.bf16.msra.mxu0 0
        %469 = vmatprep.subr.bf16.mxu0 0
        %470 = vmatpush1.bf16.msra.mxu0 0
        %471 = vmatprep.subr.bf16.mxu0 0
        %472 = vmatpush1.bf16.msra.mxu0 0
        %473 = vmatprep.subr.bf16.mxu0 0
        %474 = vmatpush1.bf16.msra.mxu0 0
        %475 = vmatprep.subr.bf16.mxu0 0
        %476 = vmatpush1.bf16.msra.mxu0 0
        %477 = vmatprep.subr.bf16.mxu0 0
        %478 = vmatpush1.bf16.msra.mxu0 0
        %479 = vmatprep.subr.bf16.mxu0 0
        %480 = vmatpush1.bf16.msra.mxu0 0
        %481 = vmatprep.subr.bf16.mxu0 0
        %482 = vmatpush1.bf16.msra.mxu0 0
        %483 = vmatprep.subr.bf16.mxu0 0
        %484 = vmatpush1.bf16.msra.mxu0 0
        %485 = vmatprep.subr.bf16.mxu0 0
        %486 = vmatpush1.bf16.msra.mxu0 0
        %487 = vmatprep.subr.bf16.mxu0 0
        %488 = vmatpush1.bf16.msra.mxu0 0
        %489 = vmatprep.subr.bf16.mxu0 0
        %490 = vmatpush1.bf16.msra.mxu0 0
        %491 = vmatprep.subr.bf16.mxu0 0
        %492 = vmatpush1.bf16.msra.mxu0 0
        %493 = vmatprep.subr.bf16.mxu0 0
        %494 = vmatpush1.bf16.msra.mxu0 0
        %495 = vmatprep.mubr.bf16.mxu0 0
        %496 = vmatmul.mubr.bf16.gmra.mrb[0].mxu0 %v461
        %v497 = vpop.f32.mrb[0].mxu0
        %v498 = vadd.f32 0.0, %v497
        %v499 = vpop.f32.mrb[0].mxu0
        %v500 = vpop.f32.mrb[0].mxu0
        %v501 = vpop.f32.mrb[0].mxu0
        %502 = vdwg.mxu0
        %v507 = vunpack.c.l.b16 %v437
        %v508 = vunpack.c.l.b16 %v438
        %v509 = vunpack.c.l.b16 %v439
        %v510 = vunpack.c.l.b16 %v440
        %v511 = vpack.c.b16 %v508, %v507
        %v512 = vpack.c.b16 %v510, %v509
        %v516 = vsel %vm459, %v436, 0
        %518 = vmatprep.subr.bf16.mxu0 0
        %519 = vmatpush1.bf16.msra.mxu0 %v511
        %520 = vmatprep.subr.bf16.mxu0 0
        %521 = vmatpush1.bf16.msra.mxu0 %v512
        %522 = vmatprep.subr.bf16.mxu0 0
        %523 = vmatpush1.bf16.msra.mxu0 0
        %524 = vmatprep.subr.bf16.mxu0 0
        %525 = vmatpush1.bf16.msra.mxu0 0
        %526 = vmatprep.subr.bf16.mxu0 0
        %527 = vmatpush1.bf16.msra.mxu0 0
        %528 = vmatprep.subr.bf16.mxu0 0
        %529 = vmatpush1.bf16.msra.mxu0 0
        %530 = vmatprep.subr.bf16.mxu0 0
        %531 = vmatpush1.bf16.msra.mxu0 0
        %532 = vmatprep.subr.bf16.mxu0 0
        %533 = vmatpush1.bf16.msra.mxu0 0
        %534 = vmatprep.subr.bf16.mxu0 0
        %535 = vmatpush1.bf16.msra.mxu0 0
        %536 = vmatprep.subr.bf16.mxu0 0
        %537 = vmatpush1.bf16.msra.mxu0 0
        %538 = vmatprep.subr.bf16.mxu0 0
        %539 = vmatpush1.bf16.msra.mxu0 0
        %540 = vmatprep.subr.bf16.mxu0 0
        %541 = vmatpush1.bf16.msra.mxu0 0
        %542 = vmatprep.subr.bf16.mxu0 0
        %543 = vmatpush1.bf16.msra.mxu0 0
        %544 = vmatprep.subr.bf16.mxu0 0
        %545 = vmatpush1.bf16.msra.mxu0 0
        %546 = vmatprep.subr.bf16.mxu0 0
        %547 = vmatpush1.bf16.msra.mxu0 0
        %548 = vmatprep.subr.bf16.mxu0 0
        %549 = vmatpush1.bf16.msra.mxu0 0
        %550 = vmatprep.mubr.bf16.mxu0 0
        %551 = vmatmul.mubr.bf16.gmra.mrb[0].mxu0 %v516
        %v552 = vpop.f32.mrb[0].mxu0
        %v553 = vadd.f32 %v498, %v552
        %v554 = vpop.f32.mrb[0].mxu0
        %v555 = vpop.f32.mrb[0].mxu0
        %v556 = vpop.f32.mrb[0].mxu0
        %557 = vdwg.mxu0
        %v558 = vld [vmem:[%s6] sm:$0x1]
        %v560 = vlaneseq
        %v561 = vshrl.u32 %v560, 7
        %v562 = vsub.s32 0, %v561
        %v563 = vrot.slane %v558, %v562
        %v565 = vadd.f32 %v553, %v563
        %v566 = vtanh.pop %v565
        %568 = vset.pattern.permute.xlu0 4
        %569 = vperm.xlu0 %568, %v565
        %v570 = vpop.permute.xlu0 %569
        %v572 = vadd.f32 %v566, %v570
        %573 = vst [vmem:[%s272] sm:$0xff] %v572
        %s574 = sand.u32 %s181, 1
        %s575 = scalar_lea.sflag [#allocation3], %s574
        %s576 = sand.u32 %s181, 1
        %s577 = smul.addr %s576, 8
        %s578 = scalar_lea.vmem [#allocation2], %s577
        // Predicated region
        $region49: #{tpu_custom_call.1} parent=47 // pred_check
          %p579 = pneg %p191
        $region50: #{tpu_custom_call.1} parent=47 // pred_check_branch
          %581 = sbr.rel (%p579) target = $region52
        $region51: #{tpu_custom_call.1} parent=47 // pred_region
          %s583 = ssub.s32 128, 128
          %584 = vsyncadd %s575, %s583
          %s585 = smul.addr %s21, 128
          %s586 = scalar_lea.hbm %s7, %s585
          %s588 = sshll.u32 %s578, 4
          %s589 = int_to_ptr.vmem [resolvable:$true] %s588
          %591 = dma.vmem_to_hbm [thread:$0]  %s589, 128, %s586, %s575
        $region52: #{tpu_custom_call.1} parent=47 // pred_fallthru
          _
      $region48: #{tpu_custom_call.1} parent=5 // pred_fallthru
        _
      %p592 = scmp.le.s32.totalorder 2, %s16
      // Predicated region
      $region53: #{tpu_custom_call.1} parent=5 // pred_check
        %p593 = pneg %p592
      $region54: #{tpu_custom_call.1} parent=5 // pred_check_branch
        %595 = sbr.rel (%p593) target = $region56
      $region55: #{tpu_custom_call.1} parent=5 // pred_region
        %s596 = ssub.s32 %s16, 2
        // Predicated region
        $region57: #{tpu_custom_call.1} parent=55 // pred_check
          %p597 = pneg %p197
        $region58: #{tpu_custom_call.1} parent=55 // pred_check_branch
          %599 = sbr.rel (%p597) target = $region60
        $region59: #{tpu_custom_call.1} parent=55 // pred_region
          %s600 = sand.u32 %s182, 1
          %s601 = scalar_lea.sflag [#allocation3], %s600
          %s602 = sand.u32 %s182, 1
          %s603 = smul.addr %s602, 8
          %s604 = scalar_lea.vmem [#allocation2], %s603
          %605 = dma.done %s601, 128
        $region60: #{tpu_custom_call.1} parent=55 // pred_fallthru
          _
      $region56: #{tpu_custom_call.1} parent=5 // pred_fallthru
        _
    $region6: #{tpu_custom_call.1} parent=1 // loop_footer
      %s20 = sadd.s32 1, %s16
    $region7: #{tpu_custom_call.1} parent=1 // loop_footer_branch
      %15 = sbr.rel target = $region3
    $region8: #{tpu_custom_call.1} parent=1 // loop_exit
      _
    %606 = vsyncpa [#allocation3], 1
    %s607 = scalar_lea.sflag [#allocation3], 1
    %608 = vsyncpa %s607, 1

</llo_original>
